<compile_context>
chip_gen: v7x
topology: tpu7x:2x2x1
jax: 0.10.0
libtpu: 0.0.40
codegen_flags: <defaults>
</compile_context>

<pallas_src>
import functools
from math import gcd

import numpy as np
import jax
import jax.numpy as jnp
from jax import lax
from jax.experimental import pallas as pl
from jax.experimental.pallas import tpu as pltpu

_NEG_INF = -1e30  # large finite negative: avoids inf-inf NaNs in the rescale


def _pixel_to_position_kernel(x_ref, gx_ref, gy_ref, o_ref,
                              m_ref, l_ref, nx_ref, ny_ref,
                              *, kt, gx_step, tail):
    k = pl.program_id(1)
    nk = pl.num_programs(1)

    @pl.when(k == 0)
    def _():
        m_ref[...] = jnp.full_like(m_ref, _NEG_INF)
        l_ref[...] = jnp.zeros_like(l_ref)
        nx_ref[...] = jnp.zeros_like(nx_ref)
        ny_ref[...] = jnp.zeros_like(ny_ref)

    s = x_ref[...].astype(jnp.float32)          # (bt, kt) logits tile

    if tail:
        # Static branch: only emitted when HW % kt != 0.  The iota/cmp/or act on
        # a single (1, kt) row (cost amortized by bt); full blocks pay only the
        # broadcast select, and kernels whose kt divides HW pay nothing at all.
        pos = lax.broadcasted_iota(jnp.int32, (1, kt), 1)
        keep = jnp.logical_or(k < nk - 1, pos < tail)
        s = jnp.where(keep, s, _NEG_INF)

    # Online softmax update.
    m_prev = m_ref[...]                                       # (bt, 1)
    m_new = jnp.maximum(m_prev, jnp.max(s, axis=-1, keepdims=True))
    alpha = jnp.exp(m_prev - m_new)                           # rescale old sums
    p = jnp.exp(s - m_new)                                    # (bt, kt)

    gx_b = gx_ref[...]        # (1, kt): in-block part of grid_x (h direction)
    gy_b = gy_ref[...]        # (1, kt): grid_y, identical for every block

    psum = jnp.sum(p, axis=-1, keepdims=True)                 # (bt, 1)
    # grid_x of block k == gx_b + k*gx_step (scalar); fold the scalar part into
    # the already-computed softmax partial sum instead of a per-element add.
    off = k.astype(jnp.float32) * gx_step

    l_ref[...] = alpha * l_ref[...] + psum
    nx_ref[...] = (alpha * nx_ref[...]
                   + jnp.sum(p * gx_b, axis=-1, keepdims=True)
                   + off * psum)
    ny_ref[...] = alpha * ny_ref[...] + jnp.sum(p * gy_b, axis=-1, keepdims=True)
    m_ref[...] = m_new

    @pl.when(k == nk - 1)
    def _():
        xy = jnp.concatenate([nx_ref[...], ny_ref[...]], axis=-1)  # (bt, 2)
        # Exact divide: runs once per batch block on a (bt, 2) vector, so an
        # approx EUP reciprocal would buy nothing and only cost accuracy.
        o_ref[...] = (xy / l_ref[...]).astype(o_ref.dtype)


def _lcm(a, b):
    return a // gcd(a, b) * b


def _round_up(x, m):
    return ((x + m - 1) // m) * m


def pixel_to_position(x: jax.Array, *, kt_max: int = 8192) -> jax.Array:
    """x: (B, 1, H, W) -> (B, 2). Matches the PyTorch PixelToPosition module.

    kt_max: lane-tile cap.  8192 (4 MiB tiles at bt=128, 8 MiB double-buffered)
    fits every generation's scoped-VMEM default; raise to 16384 on v6e/v7x.
    """
    b, c, h, w = x.shape
    assert c == 1, "PixelToPosition requires a single channel"
    assert h > 1 and w > 1, "grid normalization needs H, W >= 2"
    hw = h * w
    x2d = x.reshape(b, hw)  # glue reshape; the reduction stays in the kernel

    # Batch (sublane) tiling.  For b > 8 make sure there are >= 2 batch blocks
    # so the "parallel" axis can shard across both of v7x's TensorCores.
    if b <= 8:
        bt = b
    else:
        bt = min(128, _round_up(pl.cdiv(b, 2), 8))

    # Pixel (lane) tiling.  kt is a multiple of both W and 128 (or == HW) so the
    # per-lane grid coordinates inside a block are compile-time constants.
    if hw <= kt_max:
        kt = hw
    else:
        step = _lcm(w, 128)
        # TODO(synk): if lcm(W,128) > kt_max (awkwardly large W) we fall back to
        # a single full-row block; correct, but may be VMEM-heavy for huge H*W.
        kt = (kt_max // step) * step if step <= kt_max else hw

    nb = pl.cdiv(b, bt)
    nk = pl.cdiv(hw, kt)
    tail = hw % kt              # valid lanes in the last pixel block (0 = none)

    sx = 2.0 / (h - 1)
    sy = 2.0 / (w - 1)
    j = np.arange(kt)
    gx_base = ((j // w).astype(np.float32) * sx - 1.0).reshape(1, kt)
    gy_base = ((j % w).astype(np.float32) * sy - 1.0).reshape(1, kt)
    gx_step = float(kt // w) * sx   # grid_x increment per pixel-block index

    out_dtype = jnp.promote_types(x.dtype, jnp.float32)  # matches torch promotion

    kernel = functools.partial(_pixel_to_position_kernel,
                               kt=kt, gx_step=gx_step, tail=tail)

    return pl.pallas_call(
        kernel,
        out_shape=jax.ShapeDtypeStruct((b, 2), out_dtype),
        grid_spec=pltpu.PrefetchScalarGridSpec(
            num_scalar_prefetch=0,
            grid=(nb, nk),
            in_specs=[
                pl.BlockSpec((bt, kt), lambda i, k: (i, k)),
                pl.BlockSpec((1, kt), lambda i, k: (0, 0)),   # fetched once
                pl.BlockSpec((1, kt), lambda i, k: (0, 0)),   # fetched once
            ],
            out_specs=pl.BlockSpec((bt, 2), lambda i, k: (i, 0)),
            scratch_shapes=[pltpu.VMEM((bt, 1), jnp.float32)] * 4,  # m, l, nx, ny
        ),
        compiler_params=pltpu.CompilerParams(
            dimension_semantics=("parallel", "arbitrary"),
        ),
    )(x2d, jnp.asarray(gx_base), jnp.asarray(gy_base))


def _reference(x: jax.Array) -> jax.Array:
    b, c, h, w = x.shape
    p = jax.nn.softmax(x.reshape(b, c, h * w).astype(jnp.float32), axis=2)
    p = p.reshape(b, c, h, w)
    gx = (jnp.arange(h, dtype=jnp.float32) / (h - 1) * 2 - 1).reshape(1, 1, h, 1)
    gy = (jnp.arange(w, dtype=jnp.float32) / (w - 1) * 2 - 1).reshape(1, 1, 1, w)
    rx = jnp.sum(p * gx, axis=(2, 3))
    ry = jnp.sum(p * gy, axis=(2, 3))
    return jnp.concatenate([rx, ry], axis=1)  # (B, 2)


if __name__ == "__main__":
    key = jax.random.PRNGKey(0)

    # Case 1: canonical small shape (single pixel block, tiny batch).
    B, C, H, W = 2, 1, 16, 16
    x = jax.random.normal(key, (B, C, H, W), dtype=jnp.float32)
    y = pixel_to_position(x)
    jax.block_until_ready(y)
    assert y.shape == (B, 2)
    assert jnp.allclose(y, _reference(x), atol=1e-5, rtol=1e-5)

    # Case 2: multi pixel-block + masked tail + 2 batch blocks (megacore path).
    #   HW = 20*128 = 2560, kt = 1024 -> 3 pixel blocks (tail = 512); B=16 -> bt=8.
    x2 = jax.random.normal(jax.random.PRNGKey(1), (16, 1, 20, 128), dtype=jnp.float32)
    y2 = pixel_to_position(x2, kt_max=1024)
    jax.block_until_ready(y2)
    assert jnp.allclose(y2, _reference(x2), atol=1e-5, rtol=1e-5)

    # Case 3: W not a multiple of 128 -> kt snaps to lcm(W, 128) = 384 (no tail).
    x3 = jax.random.normal(jax.random.PRNGKey(2), (4, 1, 64, 24), dtype=jnp.float32)
    y3 = pixel_to_position(x3, kt_max=512)
    jax.block_until_ready(y3)
    assert jnp.allclose(y3, _reference(x3), atol=1e-5, rtol=1e-5)

    print("KERNEL_OK")
</pallas_src>

<mosaic_0001>
module attributes {stable_mosaic.version = 11 : i64} {
  func.func @_pixel_to_position_kernel(%arg0: i32, %arg1: i32, %arg2: memref<2x256xf32, #tpu.memory_space<vmem>>, %arg3: memref<1x256xf32, #tpu.memory_space<vmem>>, %arg4: memref<1x256xf32, #tpu.memory_space<vmem>>, %arg5: memref<2x2xf32, #tpu.memory_space<vmem>>, %arg6: memref<2x1xf32, #tpu.memory_space<vmem>>, %arg7: memref<2x1xf32, #tpu.memory_space<vmem>>, %arg8: memref<2x1xf32, #tpu.memory_space<vmem>>, %arg9: memref<2x1xf32, #tpu.memory_space<vmem>>) attributes {dimension_semantics = [#tpu.dimension_semantics<parallel>, #tpu.dimension_semantics<arbitrary>], iteration_bounds = array<i64: 1, 1>, scalar_prefetch = 0 : i64, scratch_operands = 4 : i64, tpu.core_type = #tpu.core_type<tc>, window_params = [{transform_indices = @transform_0, window_bounds = array<i64: 2, 256>}, {pipeline_mode = #tpu.pipeline_mode<synchronous>, transform_indices = @transform_1, window_bounds = array<i64: 1, 256>}, {pipeline_mode = #tpu.pipeline_mode<synchronous>, transform_indices = @transform_2, window_bounds = array<i64: 1, 256>}, {transform_indices = @transform_3, window_bounds = array<i64: 2, 2>}]} {
    %c0_i32 = arith.constant 0 : i32
    %0 = arith.cmpi eq, %arg1, %c0_i32 : i32
    %1 = arith.extui %0 : i1 to i32
    %c0_i32_0 = arith.constant 0 : i32
    %2 = arith.cmpi ne, %1, %c0_i32_0 : i32
    scf.if %2 {
      %cst_28 = arith.constant -1.000000e+30 : f32
      %46 = vector.broadcast %cst_28 : f32 to vector<2x1xf32>
      %c0_29 = arith.constant 0 : index
      %c0_30 = arith.constant 0 : index
      %47 = vector.load %arg6[%c0_29, %c0_30] : memref<2x1xf32, #tpu.memory_space<vmem>>, vector<2x1xf32>
      tpu.vector_store %arg6[%c0_29, %c0_30], %46 {strides = array<i32>} : memref<2x1xf32, #tpu.memory_space<vmem>>, vector<2x1xf32>,
      %cst_31 = arith.constant 0.000000e+00 : f32
      %48 = vector.broadcast %cst_31 : f32 to vector<2x1xf32>
      %c0_32 = arith.constant 0 : index
      %c0_33 = arith.constant 0 : index
      %49 = vector.load %arg7[%c0_32, %c0_33] : memref<2x1xf32, #tpu.memory_space<vmem>>, vector<2x1xf32>
      tpu.vector_store %arg7[%c0_32, %c0_33], %48 {strides = array<i32>} : memref<2x1xf32, #tpu.memory_space<vmem>>, vector<2x1xf32>,
      %cst_34 = arith.constant 0.000000e+00 : f32
      %50 = vector.broadcast %cst_34 : f32 to vector<2x1xf32>
      %c0_35 = arith.constant 0 : index
      %c0_36 = arith.constant 0 : index
      %51 = vector.load %arg8[%c0_35, %c0_36] : memref<2x1xf32, #tpu.memory_space<vmem>>, vector<2x1xf32>
      tpu.vector_store %arg8[%c0_35, %c0_36], %50 {strides = array<i32>} : memref<2x1xf32, #tpu.memory_space<vmem>>, vector<2x1xf32>,
      %cst_37 = arith.constant 0.000000e+00 : f32
      %52 = vector.broadcast %cst_37 : f32 to vector<2x1xf32>
      %c0_38 = arith.constant 0 : index
      %c0_39 = arith.constant 0 : index
      %53 = vector.load %arg9[%c0_38, %c0_39] : memref<2x1xf32, #tpu.memory_space<vmem>>, vector<2x1xf32>
      tpu.vector_store %arg9[%c0_38, %c0_39], %52 {strides = array<i32>} : memref<2x1xf32, #tpu.memory_space<vmem>>, vector<2x1xf32>,
    } else {
    }
    %c0 = arith.constant 0 : index
    %c0_1 = arith.constant 0 : index
    %3 = vector.load %arg2[%c0, %c0_1] : memref<2x256xf32, #tpu.memory_space<vmem>>, vector<2x256xf32>
    %c0_2 = arith.constant 0 : index
    %c0_3 = arith.constant 0 : index
    %4 = vector.load %arg6[%c0_2, %c0_3] : memref<2x1xf32, #tpu.memory_space<vmem>>, vector<2x1xf32>
    %cst = arith.constant dense<0xFF800000> : vector<2xf32>
    %5 = vector.multi_reduction <maximumf>, %3, %cst [1] : vector<2x256xf32> to vector<2xf32>
    %6 = vector.shape_cast %5 : vector<2xf32> to vector<2x1xf32>
    %7 = arith.maximumf %4, %6 : vector<2x1xf32>
    %8 = arith.subf %4, %7 : vector<2x1xf32>
    %9 = math.exp %8 : vector<2x1xf32>
    %10 = vector.broadcast %7 : vector<2x1xf32> to vector<2x256xf32>
    %11 = arith.subf %3, %10 : vector<2x256xf32>
    %12 = math.exp %11 : vector<2x256xf32>
    %c0_4 = arith.constant 0 : index
    %c0_5 = arith.constant 0 : index
    %13 = vector.load %arg3[%c0_4, %c0_5] : memref<1x256xf32, #tpu.memory_space<vmem>>, vector<1x256xf32>
    %c0_6 = arith.constant 0 : index
    %c0_7 = arith.constant 0 : index
    %14 = vector.load %arg4[%c0_6, %c0_7] : memref<1x256xf32, #tpu.memory_space<vmem>>, vector<1x256xf32>
    %cst_8 = arith.constant dense<0.000000e+00> : vector<2xf32>
    %15 = vector.multi_reduction <add>, %12, %cst_8 [1] : vector<2x256xf32> to vector<2xf32>
    %16 = vector.shape_cast %15 : vector<2xf32> to vector<2x1xf32>
    %17 = arith.sitofp %arg1 : i32 to f32
    %cst_9 = arith.constant 2.13333344 : f32
    %18 = arith.mulf %17, %cst_9 : f32
    %c0_10 = arith.constant 0 : index
    %c0_11 = arith.constant 0 : index
    %19 = vector.load %arg7[%c0_10, %c0_11] : memref<2x1xf32, #tpu.memory_space<vmem>>, vector<2x1xf32>
    %20 = arith.mulf %9, %19 : vector<2x1xf32>
    %21 = arith.addf %20, %16 : vector<2x1xf32>
    %c0_12 = arith.constant 0 : index
    %c0_13 = arith.constant 0 : index
    %22 = vector.load %arg7[%c0_12, %c0_13] : memref<2x1xf32, #tpu.memory_space<vmem>>, vector<2x1xf32>
    tpu.vector_store %arg7[%c0_12, %c0_13], %21 {strides = array<i32>} : memref<2x1xf32, #tpu.memory_space<vmem>>, vector<2x1xf32>,
    %c0_14 = arith.constant 0 : index
    %c0_15 = arith.constant 0 : index
    %23 = vector.load %arg8[%c0_14, %c0_15] : memref<2x1xf32, #tpu.memory_space<vmem>>, vector<2x1xf32>
    %24 = arith.mulf %9, %23 : vector<2x1xf32>
    %25 = vector.broadcast %13 : vector<1x256xf32> to vector<2x256xf32>
    %26 = arith.mulf %12, %25 : vector<2x256xf32>
    %cst_16 = arith.constant dense<0.000000e+00> : vector<2xf32>
    %27 = vector.multi_reduction <add>, %26, %cst_16 [1] : vector<2x256xf32> to vector<2xf32>
    %28 = vector.shape_cast %27 : vector<2xf32> to vector<2x1xf32>
    %29 = arith.addf %24, %28 : vector<2x1xf32>
    %30 = vector.broadcast %18 : f32 to vector<2x1xf32>
    %31 = arith.mulf %30, %16 : vector<2x1xf32>
    %32 = arith.addf %29, %31 : vector<2x1xf32>
    %c0_17 = arith.constant 0 : index
    %c0_18 = arith.constant 0 : index
    %33 = vector.load %arg8[%c0_17, %c0_18] : memref<2x1xf32, #tpu.memory_space<vmem>>, vector<2x1xf32>
    tpu.vector_store %arg8[%c0_17, %c0_18], %32 {strides = array<i32>} : memref<2x1xf32, #tpu.memory_space<vmem>>, vector<2x1xf32>,
    %c0_19 = arith.constant 0 : index
    %c0_20 = arith.constant 0 : index
    %34 = vector.load %arg9[%c0_19, %c0_20] : memref<2x1xf32, #tpu.memory_space<vmem>>, vector<2x1xf32>
    %35 = arith.mulf %9, %34 : vector<2x1xf32>
    %36 = vector.broadcast %14 : vector<1x256xf32> to vector<2x256xf32>
    %37 = arith.mulf %12, %36 : vector<2x256xf32>
    %cst_21 = arith.constant dense<0.000000e+00> : vector<2xf32>
    %38 = vector.multi_reduction <add>, %37, %cst_21 [1] : vector<2x256xf32> to vector<2xf32>
    %39 = vector.shape_cast %38 : vector<2xf32> to vector<2x1xf32>
    %40 = arith.addf %35, %39 : vector<2x1xf32>
    %c0_22 = arith.constant 0 : index
    %c0_23 = arith.constant 0 : index
    %41 = vector.load %arg9[%c0_22, %c0_23] : memref<2x1xf32, #tpu.memory_space<vmem>>, vector<2x1xf32>
    tpu.vector_store %arg9[%c0_22, %c0_23], %40 {strides = array<i32>} : memref<2x1xf32, #tpu.memory_space<vmem>>, vector<2x1xf32>,
    %c0_24 = arith.constant 0 : index
    %c0_25 = arith.constant 0 : index
    %42 = vector.load %arg6[%c0_24, %c0_25] : memref<2x1xf32, #tpu.memory_space<vmem>>, vector<2x1xf32>
    tpu.vector_store %arg6[%c0_24, %c0_25], %7 {strides = array<i32>} : memref<2x1xf32, #tpu.memory_space<vmem>>, vector<2x1xf32>,
    %c0_i32_26 = arith.constant 0 : i32
    %43 = arith.cmpi eq, %arg1, %c0_i32_26 : i32
    %44 = arith.extui %43 : i1 to i32
    %c0_i32_27 = arith.constant 0 : i32
    %45 = arith.cmpi ne, %44, %c0_i32_27 : i32
    scf.if %45 {
      %c0_28 = arith.constant 0 : index
      %c0_29 = arith.constant 0 : index
      %46 = vector.load %arg8[%c0_28, %c0_29] : memref<2x1xf32, #tpu.memory_space<vmem>>, vector<2x1xf32>
      %c0_30 = arith.constant 0 : index
      %c0_31 = arith.constant 0 : index
      %47 = vector.load %arg9[%c0_30, %c0_31] : memref<2x1xf32, #tpu.memory_space<vmem>>, vector<2x1xf32>
      %48 = tpu.concatenate %46, %47 in 1 : vector<2x1xf32>, vector<2x1xf32> -> vector<2x2xf32>
      %c0_32 = arith.constant 0 : index
      %c0_33 = arith.constant 0 : index
      %49 = vector.load %arg7[%c0_32, %c0_33] : memref<2x1xf32, #tpu.memory_space<vmem>>, vector<2x1xf32>
      %50 = vector.broadcast %49 : vector<2x1xf32> to vector<2x2xf32>
      %51 = arith.divf %48, %50 : vector<2x2xf32>
      %c0_34 = arith.constant 0 : index
      %c0_35 = arith.constant 0 : index
      %52 = vector.load %arg5[%c0_34, %c0_35] : memref<2x2xf32, #tpu.memory_space<vmem>>, vector<2x2xf32>
      tpu.vector_store %arg5[%c0_34, %c0_35], %51 {strides = array<i32>} : memref<2x2xf32, #tpu.memory_space<vmem>>, vector<2x2xf32>,
    } else {
    }
    return
  }
  func.func @transform_0(%arg0: i32, %arg1: i32) -> (i32, i32) {
    %c0_i32 = arith.constant 0 : i32
    return %arg0, %arg1 : i32, i32
  }
  func.func @transform_1(%arg0: i32, %arg1: i32) -> (i32, i32) {
    %c0_i32 = arith.constant 0 : i32
    %c0_i32_0 = arith.constant 0 : i32
    %c0_i32_1 = arith.constant 0 : i32
    return %c0_i32, %c0_i32_0 : i32, i32
  }
  func.func @transform_2(%arg0: i32, %arg1: i32) -> (i32, i32) {
    %c0_i32 = arith.constant 0 : i32
    %c0_i32_0 = arith.constant 0 : i32
    %c0_i32_1 = arith.constant 0 : i32
    return %c0_i32, %c0_i32_0 : i32, i32
  }
  func.func @transform_3(%arg0: i32, %arg1: i32) -> (i32, i32) {
    %c0_i32 = arith.constant 0 : i32
    %c0_i32_0 = arith.constant 0 : i32
    return %arg0, %c0_i32 : i32, i32
  }
}

</mosaic_0001>

<llo_original>
// kernel: tpu_custom_call.1
$region0: #{tpu_custom_call.1}
  #allocation0 [shape = 'u32[]', space=smem, size = 0x4, offset = 0x4, fixed_abs, tag = 'smem constant byte address 0x4 - core index']
  #allocation1 [shape = 'u32[144,128]{1,0:T(1,128)}', space=vmem, size = 0x12000, scoped, tag = 'internal scratch']
  #allocation2 [shape = 'f32[2,1]{1,0:T(2,128)}', space=vmem, size = 0x400, scoped, tag = 'scratch operand']
  #allocation3 [shape = 'f32[2,1]{1,0:T(2,128)}', space=vmem, size = 0x400, scoped, tag = 'scratch operand']
  #allocation4 [shape = 'f32[2,1]{1,0:T(2,128)}', space=vmem, size = 0x400, scoped, tag = 'scratch operand']
  #allocation5 [shape = 'f32[2,1]{1,0:T(2,128)}', space=vmem, size = 0x400, scoped, tag = 'scratch operand']
  %s0 = inlined_call_operand.hbm [shape: f32[2,256], index: 0, kind: input, shape index: {}]
  %s1 = inlined_call_operand.vmem [shape: f32[1,256], index: 1, kind: input, shape index: {}]
  %s2 = inlined_call_operand.vmem [shape: f32[1,256], index: 2, kind: input, shape index: {}]
  %s3 = inlined_call_operand.hbm [shape: f32[2,2], index: 3, kind: output, shape index: {}]
  %s4 = sld [smem:[#allocation0]]
  $region34: #{tpu_custom_call.1} parent=0
    _
  %s6 = ssub.s32 1, %s4
  %s7 = scalar_select 0, %s6, %s4
  $region1: #{tpu_custom_call.1} parent=0
    #allocation6 [shape = 'u8[2048]{0}', space=vmem, size = 0x800, scoped, tag = 'input window, operand 0, single buffered']
    #allocation7 [shape = 's32[1]{0}', space=sflag, size = 0x4, scoped, tag = 'scoped memory for tpu_custom_call.1']
    #allocation8 [shape = 's32[1]{0}', space=sflag, size = 0x4, scoped, tag = 'scoped memory for tpu_custom_call.1']
    #allocation9 [shape = 'u8[1024]{0}', space=vmem, size = 0x400, scoped, tag = 'output window, operand 0, single buffered']
    %8 = vsyncpa [#allocation7], 0
    %9 = vsyncpa [#allocation8], 0
    // Predicated region
    $region2: #{tpu_custom_call.1} parent=1 // pred_check
      _
    $region3: #{tpu_custom_call.1} parent=1 // pred_check_branch
      %11 = sbr.rel (0) target = $region5
    $region4: #{tpu_custom_call.1} parent=1 // pred_region
      %s13 = ssub.s32 64, 64
      %14 = vsyncadd [#allocation7], %s13
      %s16 = sshll.u32 [#allocation6], 4
      %s17 = int_to_ptr.vmem [resolvable:$true] %s16
      %19 = dma.hbm_to_vmem [thread:$0]  %s0, 64, %s17, [#allocation7]
    $region5: #{tpu_custom_call.1} parent=1 // pred_fallthru
      _
    // Predicated region
    $region6: #{tpu_custom_call.1} parent=1 // pred_check
      _
    $region7: #{tpu_custom_call.1} parent=1 // pred_check_branch
      %21 = sbr.rel (0) target = $region9
    $region8: #{tpu_custom_call.1} parent=1 // pred_region
      _
    $region9: #{tpu_custom_call.1} parent=1 // pred_fallthru
      _
    // Predicated region
    $region10: #{tpu_custom_call.1} parent=1 // pred_check
      _
    $region11: #{tpu_custom_call.1} parent=1 // pred_check_branch
      %23 = sbr.rel (0) target = $region13
    $region12: #{tpu_custom_call.1} parent=1 // pred_region
      _
    $region13: #{tpu_custom_call.1} parent=1 // pred_fallthru
      _
    // Predicated region
    $region14: #{tpu_custom_call.1} parent=1 // pred_check
      _
    $region15: #{tpu_custom_call.1} parent=1 // pred_check_branch
      %25 = sbr.rel (0) target = $region17
    $region16: #{tpu_custom_call.1} parent=1 // pred_region
      %26 = dma.done [#allocation7], 64
    $region17: #{tpu_custom_call.1} parent=1 // pred_fallthru
      _
    %p27 = scmp.eq.s32.totalorder 0, 0
    // Predicated region
    $region18: #{tpu_custom_call.1} parent=1 // pred_check
      %p28 = pneg %p27
    $region19: #{tpu_custom_call.1} parent=1 // pred_check_branch
      %30 = sbr.rel (%p28) target = $region21
    $region20: #{tpu_custom_call.1} parent=1 // pred_region
      %vm31 = vcmask 1024
      %32 = vst.msk [vmem:[#allocation2] sm:$0x3] %vm31, -1e+30
      %33 = vst.msk [vmem:[#allocation3] sm:$0x3] %vm31, 0.0
      %34 = vst.msk [vmem:[#allocation4] sm:$0x3] %vm31, 0.0
      %35 = vst.msk [vmem:[#allocation5] sm:$0x3] %vm31, 0.0
    $region21: #{tpu_custom_call.1} parent=1 // pred_fallthru
      _
    %v36 = vld [vmem:[#allocation6] sm:$0xf]
    %v37 = vld [vmem:[#allocation2] sm:$0x3]
    %v40 = vunpack.c.l.s4 1983009808
    %v41 = vunpack.c.0.s8 %v40
    %v42 = vlaneseq
    %v43 = vshrl.u32 %v42, 7
    %v44 = vsub.s32 %v41, %v43
    %v45 = vrot.slane %v36, %v44
    %v46 = vcombine.high %v45, %v45
    %vm49 = vcmask 1041408
    %v50 = vsel %vm49, %v45, -inf
    %v51 = vsel %vm49, %v46, -inf
    %v52 = vmax.f32 %v50, %v51
    %53 = vmax.xlane.f32.xlu0 %v52
    %v54 = vpop.xlane.xlu0 %53
    %v55 = vmax.f32 %v37, %v54
    %v56 = vsub.f32 %v37, %v55
    %v57 = vmul.f32 %v56, 1.442695
    %v58 = vpow.pop %v57
    %60 = vset.pattern.permute.xlu0 0
    %61 = vperm.xlu0 %60, %v55
    %v62 = vpop.permute.xlu0 %61
    %v64 = vunpack.c.l.s4 269488144
    %v65 = vunpack.c.0.s8 %v64
    %v66 = vlaneseq
    %v67 = vshrl.u32 %v66, 7
    %v68 = vsub.s32 %v65, %v67
    %v69 = vrot.slane %v62, %v68
    %v71 = vsub.f32 %v36, %v69
    %v72 = vmul.f32 %v71, 1.442695
    %v73 = vpow.pop %v72
    %v74 = vld [vmem:[%s1] sm:$0x3]
    %v75 = vld [vmem:[%s2] sm:$0x3]
    %v78 = vunpack.c.l.s4 1983009808
    %v79 = vunpack.c.0.s8 %v78
    %v80 = vlaneseq
    %v81 = vshrl.u32 %v80, 7
    %v82 = vsub.s32 %v79, %v81
    %v83 = vrot.slane %v73, %v82
    %v84 = vcombine.high %v83, %v83
    %v87 = vsel %vm49, %v83, 0.0
    %v88 = vsel %vm49, %v84, 0.0
    %v89 = vadd.f32 %v87, %v88
    %90 = vadd.xlane.f32.xlu0 %v89
    %v91 = vpop.xlane.xlu0 %90
    %s92 = scvt.s32.f32 0
    %s93 = smul.f32 %s92, 2.1333334
    %v94 = vld [vmem:[#allocation3] sm:$0x3]
    %v95 = vmul.f32 %v58, %v94
    %v96 = vadd.f32 %v95, %v91
    %vm97 = vcmask 1024
    %98 = vst.msk [vmem:[#allocation3] sm:$0x3] %vm97, %v96
    %v99 = vld [vmem:[#allocation4] sm:$0x3]
    %v100 = vmul.f32 %v58, %v99
    %v102 = vlaneseq
    %v103 = vshrl.u32 %v102, 7
    %v104 = vsub.s32 0, %v103
    %v105 = vrot.slane %v74, %v104
    %v106 = vlaneseq
    %v107 = vshrl.u32 %v106, 7
    %v108 = vsub.s32 1, %v107
    %v109 = vrot.slane %v74, %v108
    %v110 = vcombine.low %v105, %v109
    %v112 = vunpack.c.l.s4 1983009808
    %v113 = vunpack.c.0.s8 %v112
    %v114 = vlaneseq
    %v115 = vshrl.u32 %v114, 7
    %v116 = vsub.s32 %v113, %v115
    %v117 = vrot.slane %v110, %v116
    %v119 = vmul.f32 %v73, %v117
    %v122 = vunpack.c.l.s4 1983009808
    %v123 = vunpack.c.0.s8 %v122
    %v124 = vlaneseq
    %v125 = vshrl.u32 %v124, 7
    %v126 = vsub.s32 %v123, %v125
    %v127 = vrot.slane %v119, %v126
    %v128 = vcombine.high %v127, %v127
    %v131 = vsel %vm49, %v127, 0.0
    %v132 = vsel %vm49, %v128, 0.0
    %v133 = vadd.f32 %v131, %v132
    %134 = vadd.xlane.f32.xlu0 %v133
    %v135 = vpop.xlane.xlu0 %134
    %v136 = vadd.f32 %v100, %v135
    %v137 = vstv %s93
    %v138 = vmul.f32 %v137, %v91
    %v139 = vadd.f32 %v136, %v138
    %140 = vst.msk [vmem:[#allocation4] sm:$0x3] %vm97, %v139
    %v141 = vld [vmem:[#allocation5] sm:$0x3]
    %v142 = vmul.f32 %v58, %v141
    %v144 = vlaneseq
    %v145 = vshrl.u32 %v144, 7
    %v146 = vsub.s32 0, %v145
    %v147 = vrot.slane %v75, %v146
    %v148 = vlaneseq
    %v149 = vshrl.u32 %v148, 7
    %v150 = vsub.s32 1, %v149
    %v151 = vrot.slane %v75, %v150
    %v152 = vcombine.low %v147, %v151
    %v154 = vunpack.c.l.s4 1983009808
    %v155 = vunpack.c.0.s8 %v154
    %v156 = vlaneseq
    %v157 = vshrl.u32 %v156, 7
    %v158 = vsub.s32 %v155, %v157
    %v159 = vrot.slane %v152, %v158
    %v161 = vmul.f32 %v73, %v159
    %v164 = vunpack.c.l.s4 1983009808
    %v165 = vunpack.c.0.s8 %v164
    %v166 = vlaneseq
    %v167 = vshrl.u32 %v166, 7
    %v168 = vsub.s32 %v165, %v167
    %v169 = vrot.slane %v161, %v168
    %v170 = vcombine.high %v169, %v169
    %v173 = vsel %vm49, %v169, 0.0
    %v174 = vsel %vm49, %v170, 0.0
    %v175 = vadd.f32 %v173, %v174
    %176 = vadd.xlane.f32.xlu0 %v175
    %v177 = vpop.xlane.xlu0 %176
    %v178 = vadd.f32 %v142, %v177
    %179 = vst.msk [vmem:[#allocation5] sm:$0x3] %vm97, %v178
    %180 = vst.msk [vmem:[#allocation2] sm:$0x3] %vm97, %v55
    // Predicated region
    $region22: #{tpu_custom_call.1} parent=1 // pred_check
      %p181 = pneg %p27
    $region23: #{tpu_custom_call.1} parent=1 // pred_check_branch
      %183 = sbr.rel (%p181) target = $region25
    $region24: #{tpu_custom_call.1} parent=1 // pred_region
      %v184 = vld [vmem:[#allocation4] sm:$0x3]
      %v185 = vld [vmem:[#allocation5] sm:$0x3]
      %187 = vrot.lane.b32.xlu0 %v185, 1
      %v188 = vpop.permute.xlu0 %187
      %vm190 = vcmask 7168
      %v191 = vsel %vm190, %v184, %v188
      %v192 = vld [vmem:[#allocation3] sm:$0x3]
      %194 = vset.pattern.permute.xlu0 0
      %195 = vperm.xlu0 %194, %v192
      %v196 = vpop.permute.xlu0 %195
      %v198 = vrcp.pop %v196
      %v199 = vmul.f32 %v191, %v198
      %vm200 = vcmask 9216
      %201 = vst.msk [vmem:[#allocation9] sm:$0x3] %vm200, %v199
    $region25: #{tpu_custom_call.1} parent=1 // pred_fallthru
      _
    // Predicated region
    $region26: #{tpu_custom_call.1} parent=1 // pred_check
      _
    $region27: #{tpu_custom_call.1} parent=1 // pred_check_branch
      %203 = sbr.rel (0) target = $region29
    $region28: #{tpu_custom_call.1} parent=1 // pred_region
      %s205 = ssub.s32 32, 32
      %206 = vsyncadd [#allocation8], %s205
      %s208 = sshll.u32 [#allocation9], 4
      %s209 = int_to_ptr.vmem [resolvable:$true] %s208
      %211 = dma.vmem_to_hbm [thread:$0]  %s209, 32, %s3, [#allocation8]
    $region29: #{tpu_custom_call.1} parent=1 // pred_fallthru
      _
    // Predicated region
    $region30: #{tpu_custom_call.1} parent=1 // pred_check
      _
    $region31: #{tpu_custom_call.1} parent=1 // pred_check_branch
      %213 = sbr.rel (0) target = $region33
    $region32: #{tpu_custom_call.1} parent=1 // pred_region
      %214 = dma.done [#allocation8], 32
    $region33: #{tpu_custom_call.1} parent=1 // pred_fallthru
      _
    %215 = vsyncpa [#allocation7], 1
    %216 = vsyncpa [#allocation8], 1

</llo_original>
